<compile_context>
chip_gen: v5e
topology: v5e:2x2
jax: 0.10.0
libtpu: 0.0.40
codegen_flags: <defaults>
</compile_context>

<pallas_src>
import jax
import jax.numpy as jnp
from jax.experimental import pallas as pl
from jax.experimental.pallas import tpu as pltpu

NEG_SLOPE = 0.01      # nn.LeakyReLU() default negative_slope
LANE = 128            # vreg lane width


def _round_up(n, m):
    return ((n + m - 1) // m) * m


def _leaky_relu(x):
    # For 0 < slope < 1, max(x, slope*x) == LeakyReLU(x); single VPU op and
    # padded zero columns stay exactly zero.
    return jnp.maximum(x, NEG_SLOPE * x)


def _num_tensorcores():
    """Best-effort: 2 TensorCores per chip on v7x, 1 on v5e/v6e."""
    try:
        kind = jax.devices()[0].device_kind.lower()
    except Exception:
        return 1
    return 2 if "7" in kind else 1


# --------------------------------------------------------------------------
# Kernel: one batch tile per grid step.  Weights/biases are full blocks with
# constant index_maps, so they stay VMEM-resident while batch tiles stream
# through the auto-generated double-buffered pipeline.
# --------------------------------------------------------------------------
def decoder_kernel(x_ref,
                   w0_ref, b0_ref,
                   w1_ref, b1_ref,
                   wo_ref, bo_ref,
                   out_ref):
    # f32 -> bf16 cast in-kernel (folded into the input DMA cost).
    x = x_ref[...].astype(jnp.bfloat16)                      # (TB, d_in)

    # dense0 + LeakyReLU (bf16 MXU inputs, f32 accumulate / bias / activation)
    h0 = jnp.dot(x, w0_ref[...], preferred_element_type=jnp.float32) + b0_ref[...]
    h0 = _leaky_relu(h0).astype(jnp.bfloat16)
    # TODO(synk): dropout skipped (eval-mode identity); a training-mode kernel
    # would draw a Bernoulli mask via pltpu.prng_seed / pltpu.stateful_bernoulli.

    # dense1 + LeakyReLU
    h1 = jnp.dot(h0, w1_ref[...], preferred_element_type=jnp.float32) + b1_ref[...]
    h1 = _leaky_relu(h1).astype(jnp.bfloat16)

    # output_layer (no activation) — weight is (128, out_dim) so the result and
    # the HBM store are already out_dim wide (no padded-lane f32 writeback).
    out = jnp.dot(h1, wo_ref[...], preferred_element_type=jnp.float32) + bo_ref[...]
    out_ref[...] = out.astype(out_ref.dtype)


# --------------------------------------------------------------------------
# One-time parameter conversion (do once, NOT per forward call):
#   PyTorch (out, in) -> (in, out), zero-pad hidden feature dims to 128 lanes,
#   cast weights to bf16 (biases stay f32, added in the f32 accumulator).
# The output layer's *output* dim is NOT padded: the kernel writes exactly
# out_dim columns.  Padded rows/cols are zero, so they contribute nothing and
# LeakyReLU(0)=0 keeps padded activations at exactly zero.
# --------------------------------------------------------------------------
def convert_params(params, compute_dtype=jnp.bfloat16):
    conv = {}
    layer_dims = []
    for idx, name in enumerate(("0", "1", "o")):
        w = params[f"w{name}"]            # (out, in)  PyTorch layout
        b = params[f"b{name}"]            # (out,)
        d_out, d_in = w.shape
        layer_dims.append((d_in, d_out))
        d_in_pad = d_in if idx == 0 else _round_up(d_in, LANE)
        d_out_pad = d_out if name == "o" else _round_up(d_out, LANE)
        wt = jnp.zeros((d_in_pad, d_out_pad), compute_dtype)
        wt = wt.at[:d_in, :d_out].set(w.T.astype(compute_dtype))
        bp = jnp.zeros((1, d_out_pad), jnp.float32)
        bp = bp.at[0, :d_out].set(b.astype(jnp.float32))
        conv[f"w{name}"] = wt
        conv[f"b{name}"] = bp
    conv["layer_dims"] = tuple(layer_dims)   # real (in, out) per layer
    return conv


def decoder_forward(x, cparams, out_dim, *, block_rows=2048):
    """x: (B, d_latent) f32.  cparams: output of convert_params."""
    B, d_in = x.shape
    w0, b0 = cparams["w0"], cparams["b0"]
    w1, b1 = cparams["w1"], cparams["b1"]
    wo, bo = cparams["wo"], cparams["bo"]
    assert wo.shape[1] == out_dim and bo.shape[1] == out_dim

    # Batch tile: this kernel is HBM/overhead bound and needs only ~3 KB of
    # VMEM per row, so use the largest tile available (default 2048 rows).
    # On v7x, size the tile so the "parallel" grid has >= 2 steps (one per
    # TensorCore).  On single-TC parts (v5e/v6e) prefer a single big tile.
    n_tc = _num_tensorcores()
    b_ceil = _round_up(max(B, 16), 16)
    tb = min(_round_up(block_rows, 16),
             _round_up(pl.cdiv(b_ceil, n_tc), 16))
    b_pad = _round_up(B, tb)
    grid = (b_pad // tb,)

    # Pad batch rows only when needed (kept f32; cast happens in-kernel).
    xp = x if b_pad == B else jnp.pad(x, ((0, b_pad - B), (0, 0)))

    # Advisory cost estimate: real (unpadded) flops, actual HBM bytes moved.
    real_dims = cparams["layer_dims"]
    flops = 2 * B * sum(di * do for di, do in real_dims)
    bytes_accessed = int(
        xp.size * xp.dtype.itemsize
        + sum(a.size * a.dtype.itemsize for a in (w0, b0, w1, b1, wo, bo))
        + b_pad * out_dim * 4)

    def const_spec(a):
        return pl.BlockSpec(a.shape, lambda i: (0, 0))

    out = pl.pallas_call(
        decoder_kernel,
        out_shape=jax.ShapeDtypeStruct((b_pad, out_dim), jnp.float32),
        grid_spec=pl.GridSpec(
            grid=grid,
            in_specs=[pl.BlockSpec((tb, d_in), lambda i: (i, 0)),
                      const_spec(w0), const_spec(b0),
                      const_spec(w1), const_spec(b1),
                      const_spec(wo), const_spec(bo)],
            out_specs=pl.BlockSpec((tb, out_dim), lambda i: (i, 0)),
        ),
        compiler_params=pltpu.CompilerParams(
            dimension_semantics=("parallel",),          # 2 TCs on v7x
            vmem_limit_bytes=32 * 1024 * 1024),         # usage is << 1 MiB
        cost_estimate=pl.CostEstimate(flops=flops,
                                      transcendentals=0,
                                      bytes_accessed=bytes_accessed),
    )(xp, w0, b0, w1, b1, wo, bo)

    # Only a cheap row slice when the batch was padded; no column slice pass.
    return out if b_pad == B else out[:B]


# --------------------------------------------------------------------------
# References
# --------------------------------------------------------------------------
def reference_forward_f32(x, params):
    """Pure-f32 JAX reference reproducing the PyTorch forward (eval mode)."""
    h = x
    for wk, bk in (("w0", "b0"), ("w1", "b1")):
        h = h @ params[wk].T + params[bk]
        h = jnp.where(h >= 0, h, NEG_SLOPE * h)
    return h @ params["wo"].T + params["bo"]


def reference_forward_mirrored(x, cparams, out_dim):
    """Mirrors the kernel numerics (bf16 matmul inputs, f32 accumulation)."""
    h = x.astype(jnp.bfloat16)
    for wk, bk in (("w0", "b0"), ("w1", "b1")):
        h = jnp.dot(h.astype(jnp.float32),
                    cparams[wk].astype(jnp.float32)) + cparams[bk]
        h = jnp.maximum(h, NEG_SLOPE * h).astype(jnp.bfloat16)
    out = jnp.dot(h.astype(jnp.float32),
                  cparams["wo"].astype(jnp.float32)) + cparams["bo"]
    return out[:, :out_dim]


def init_params(key, hidden_layers, input_size):
    """hidden_layers: decoder-order list, e.g. [8, 32, 64] (latent -> widest).

    dense_i: Linear(hidden_layers[i], hidden_layers[i+1])
    output_layer: Linear(hidden_layers[-1], input_size)
    Weights stored PyTorch-style as (out, in).
    """
    dims = list(hidden_layers) + [input_size]
    keys = jax.random.split(key, 2 * (len(dims) - 1))
    params = {}
    names = [f"{i}" for i in range(len(hidden_layers) - 1)] + ["o"]
    for idx, name in enumerate(names):
        d_in, d_out = dims[idx], dims[idx + 1]
        kw, kb = keys[2 * idx], keys[2 * idx + 1]
        bound = 1.0 / jnp.sqrt(d_in)
        params[f"w{name}"] = jax.random.uniform(
            kw, (d_out, d_in), jnp.float32, -bound, bound)
        params[f"b{name}"] = jax.random.uniform(
            kb, (d_out,), jnp.float32, -bound, bound)
    return params


if __name__ == "__main__":
    # Synthetic "encoder" config:
    #   encoder.input_size = 16, encoder.n_layers = 2
    #   encoder.hidden_layers (encoder order) = [64, 32, 8]
    #   -> decoder.hidden_layers = [8, 32, 64]
    #   dense0: Linear(8, 32), dense1: Linear(32, 64), output: Linear(64, 16)
    input_size = 16
    decoder_hidden = [8, 32, 64]
    batch = 512

    key = jax.random.PRNGKey(0)
    k_x, k_p = jax.random.split(key)
    x = jax.random.normal(k_x, (batch, decoder_hidden[0]), jnp.float32)
    params = init_params(k_p, decoder_hidden, input_size)

    # One-time layout conversion (transpose + pad + bf16 cast).
    cparams = convert_params(params)

    out = decoder_forward(x, cparams, input_size)
    out = jax.block_until_ready(out)
    assert out.shape == (batch, input_size), out.shape

    ref_mirror = reference_forward_mirrored(x, cparams, input_size)
    ref_f32 = reference_forward_f32(x, params)

    # Tight check against a reference mirroring the kernel's bf16 numerics.
    assert jnp.allclose(out, ref_mirror, atol=1e-3, rtol=1e-3), \
        float(jnp.max(jnp.abs(out - ref_mirror)))
    # Loose check against the pure-f32 PyTorch-equivalent reference
    # (bf16 MXU inputs => loosened tolerance).
    assert jnp.allclose(out, ref_f32, atol=7e-2, rtol=7e-2), \
        float(jnp.max(jnp.abs(out - ref_f32)))

    # Exercise the non-multiple-of-tile batch padding/slicing path too.
    x2 = x[:37]
    out2 = jax.block_until_ready(decoder_forward(x2, cparams, input_size))
    assert out2.shape == (37, input_size), out2.shape
    assert jnp.allclose(out2, ref_mirror[:37], atol=1e-3, rtol=1e-3)

    print("KERNEL_OK")
</pallas_src>

<mosaic_0001>
module attributes {stable_mosaic.version = 11 : i64} {
  func.func @decoder_kernel(%arg0: i32, %arg1: memref<512x8xf32, #tpu.memory_space<vmem>>, %arg2: memref<8x128xbf16, #tpu.memory_space<vmem>>, %arg3: memref<1x128xf32, #tpu.memory_space<vmem>>, %arg4: memref<128x128xbf16, #tpu.memory_space<vmem>>, %arg5: memref<1x128xf32, #tpu.memory_space<vmem>>, %arg6: memref<128x16xbf16, #tpu.memory_space<vmem>>, %arg7: memref<1x16xf32, #tpu.memory_space<vmem>>, %arg8: memref<512x16xf32, #tpu.memory_space<vmem>>) attributes {dimension_semantics = [#tpu.dimension_semantics<parallel>], iteration_bounds = array<i64: 1>, scalar_prefetch = 0 : i64, scratch_operands = 0 : i64, tpu.core_type = #tpu.core_type<tc>, window_params = [{transform_indices = @transform_0, window_bounds = array<i64: 512, 8>}, {pipeline_mode = #tpu.pipeline_mode<synchronous>, transform_indices = @transform_1, window_bounds = array<i64: 8, 128>}, {pipeline_mode = #tpu.pipeline_mode<synchronous>, transform_indices = @transform_2, window_bounds = array<i64: 1, 128>}, {pipeline_mode = #tpu.pipeline_mode<synchronous>, transform_indices = @transform_3, window_bounds = array<i64: 128, 128>}, {pipeline_mode = #tpu.pipeline_mode<synchronous>, transform_indices = @transform_4, window_bounds = array<i64: 1, 128>}, {pipeline_mode = #tpu.pipeline_mode<synchronous>, transform_indices = @transform_5, window_bounds = array<i64: 128, 16>}, {pipeline_mode = #tpu.pipeline_mode<synchronous>, transform_indices = @transform_6, window_bounds = array<i64: 1, 16>}, {transform_indices = @transform_7, window_bounds = array<i64: 512, 16>}]} {
    %c0 = arith.constant 0 : index
    %c0_0 = arith.constant 0 : index
    %0 = vector.load %arg1[%c0, %c0_0] : memref<512x8xf32, #tpu.memory_space<vmem>>, vector<512x8xf32>
    %1 = arith.truncf %0 : vector<512x8xf32> to vector<512x8xbf16>
    %c0_1 = arith.constant 0 : index
    %c0_2 = arith.constant 0 : index
    %2 = vector.load %arg2[%c0_1, %c0_2] : memref<8x128xbf16, #tpu.memory_space<vmem>>, vector<8x128xbf16>
    %cst = arith.constant dense<0.000000e+00> : vector<512x128xf32>
    %3 = tpu.matmul %1, %2, %cst {dimension_numbers = #tpu.dot_dimension_numbers<[1], [0], [0], [1], [0, 0, 1, 1], [], []>} : vector<512x8xbf16>, vector<8x128xbf16>, vector<512x128xf32> -> vector<512x128xf32>
    %c0_3 = arith.constant 0 : index
    %c0_4 = arith.constant 0 : index
    %4 = vector.load %arg3[%c0_3, %c0_4] : memref<1x128xf32, #tpu.memory_space<vmem>>, vector<1x128xf32>
    %5 = vector.broadcast %4 : vector<1x128xf32> to vector<512x128xf32>
    %6 = arith.addf %3, %5 : vector<512x128xf32>
    %cst_5 = arith.constant 0.00999999977 : f32
    %7 = vector.broadcast %cst_5 : f32 to vector<512x128xf32>
    %8 = arith.mulf %7, %6 : vector<512x128xf32>
    %9 = arith.maximumf %6, %8 : vector<512x128xf32>
    %10 = arith.truncf %9 : vector<512x128xf32> to vector<512x128xbf16>
    %c0_6 = arith.constant 0 : index
    %c0_7 = arith.constant 0 : index
    %11 = vector.load %arg4[%c0_6, %c0_7] : memref<128x128xbf16, #tpu.memory_space<vmem>>, vector<128x128xbf16>
    %cst_8 = arith.constant dense<0.000000e+00> : vector<512x128xf32>
    %12 = tpu.matmul %10, %11, %cst_8 {dimension_numbers = #tpu.dot_dimension_numbers<[1], [0], [0], [1], [0, 0, 1, 1], [], []>} : vector<512x128xbf16>, vector<128x128xbf16>, vector<512x128xf32> -> vector<512x128xf32>
    %c0_9 = arith.constant 0 : index
    %c0_10 = arith.constant 0 : index
    %13 = vector.load %arg5[%c0_9, %c0_10] : memref<1x128xf32, #tpu.memory_space<vmem>>, vector<1x128xf32>
    %14 = vector.broadcast %13 : vector<1x128xf32> to vector<512x128xf32>
    %15 = arith.addf %12, %14 : vector<512x128xf32>
    %cst_11 = arith.constant 0.00999999977 : f32
    %16 = vector.broadcast %cst_11 : f32 to vector<512x128xf32>
    %17 = arith.mulf %16, %15 : vector<512x128xf32>
    %18 = arith.maximumf %15, %17 : vector<512x128xf32>
    %19 = arith.truncf %18 : vector<512x128xf32> to vector<512x128xbf16>
    %c0_12 = arith.constant 0 : index
    %c0_13 = arith.constant 0 : index
    %20 = vector.load %arg6[%c0_12, %c0_13] : memref<128x16xbf16, #tpu.memory_space<vmem>>, vector<128x16xbf16>
    %cst_14 = arith.constant dense<0.000000e+00> : vector<512x16xf32>
    %21 = tpu.matmul %19, %20, %cst_14 {dimension_numbers = #tpu.dot_dimension_numbers<[1], [0], [0], [1], [0, 0, 1, 1], [], []>} : vector<512x128xbf16>, vector<128x16xbf16>, vector<512x16xf32> -> vector<512x16xf32>
    %c0_15 = arith.constant 0 : index
    %c0_16 = arith.constant 0 : index
    %22 = vector.load %arg7[%c0_15, %c0_16] : memref<1x16xf32, #tpu.memory_space<vmem>>, vector<1x16xf32>
    %23 = vector.broadcast %22 : vector<1x16xf32> to vector<512x16xf32>
    %24 = arith.addf %21, %23 : vector<512x16xf32>
    %c0_17 = arith.constant 0 : index
    %c0_18 = arith.constant 0 : index
    %25 = vector.load %arg8[%c0_17, %c0_18] : memref<512x16xf32, #tpu.memory_space<vmem>>, vector<512x16xf32>
    tpu.vector_store %arg8[%c0_17, %c0_18], %24 {strides = array<i32>} : memref<512x16xf32, #tpu.memory_space<vmem>>, vector<512x16xf32>,
    return
  }
  func.func @transform_0(%arg0: i32) -> (i32, i32) {
    %c0_i32 = arith.constant 0 : i32
    %c0_i32_0 = arith.constant 0 : i32
    return %arg0, %c0_i32 : i32, i32
  }
  func.func @transform_1(%arg0: i32) -> (i32, i32) {
    %c0_i32 = arith.constant 0 : i32
    %c0_i32_0 = arith.constant 0 : i32
    %c0_i32_1 = arith.constant 0 : i32
    return %c0_i32, %c0_i32_0 : i32, i32
  }
  func.func @transform_2(%arg0: i32) -> (i32, i32) {
    %c0_i32 = arith.constant 0 : i32
    %c0_i32_0 = arith.constant 0 : i32
    %c0_i32_1 = arith.constant 0 : i32
    return %c0_i32, %c0_i32_0 : i32, i32
  }
  func.func @transform_3(%arg0: i32) -> (i32, i32) {
    %c0_i32 = arith.constant 0 : i32
    %c0_i32_0 = arith.constant 0 : i32
    %c0_i32_1 = arith.constant 0 : i32
    return %c0_i32, %c0_i32_0 : i32, i32
  }
  func.func @transform_4(%arg0: i32) -> (i32, i32) {
    %c0_i32 = arith.constant 0 : i32
    %c0_i32_0 = arith.constant 0 : i32
    %c0_i32_1 = arith.constant 0 : i32
    return %c0_i32, %c0_i32_0 : i32, i32
  }
  func.func @transform_5(%arg0: i32) -> (i32, i32) {
    %c0_i32 = arith.constant 0 : i32
    %c0_i32_0 = arith.constant 0 : i32
    %c0_i32_1 = arith.constant 0 : i32
    return %c0_i32, %c0_i32_0 : i32, i32
  }
  func.func @transform_6(%arg0: i32) -> (i32, i32) {
    %c0_i32 = arith.constant 0 : i32
    %c0_i32_0 = arith.constant 0 : i32
    %c0_i32_1 = arith.constant 0 : i32
    return %c0_i32, %c0_i32_0 : i32, i32
  }
  func.func @transform_7(%arg0: i32) -> (i32, i32) {
    %c0_i32 = arith.constant 0 : i32
    %c0_i32_0 = arith.constant 0 : i32
    return %arg0, %c0_i32 : i32, i32
  }
}

</mosaic_0001>

<llo_original>
// kernel: tpu_custom_call.1
$region0: #{tpu_custom_call.1}
  #allocation0 [shape = 'u32[]', space=smem, size = 0x4, offset = 0x4, fixed_abs, tag = 'smem constant byte address 0x4 - core index']
  #allocation1 [shape = 'u32[72,128]{1,0:T(1,128)}', space=vmem, size = 0x9000, scoped, tag = 'internal scratch']
  %s0 = inlined_call_operand.vmem [shape: f32[512,8], index: 0, kind: input, shape index: {}]
  %s1 = inlined_call_operand.vmem [shape: bf16[8,128], index: 1, kind: input, shape index: {}]
  %s2 = inlined_call_operand.vmem [shape: f32[1,128], index: 2, kind: input, shape index: {}]
  %s3 = inlined_call_operand.vmem [shape: bf16[128,128], index: 3, kind: input, shape index: {}]
  %s4 = inlined_call_operand.vmem [shape: f32[1,128], index: 4, kind: input, shape index: {}]
  %s5 = inlined_call_operand.vmem [shape: bf16[128,16], index: 5, kind: input, shape index: {}]
  %s6 = inlined_call_operand.vmem [shape: f32[1,16], index: 6, kind: input, shape index: {}]
  %s7 = inlined_call_operand.vmem [shape: f32[512,16], index: 7, kind: output, shape index: {}]
  %s8 = sld [smem:[#allocation0]]
  $region38: #{tpu_custom_call.1} parent=0
    _
  %s10 = ssub.s32 1, %s8
  %s11 = scalar_select 0, %s10, %s8
  // Predicated region
  $region2: #{tpu_custom_call.1} parent=0 // pred_check
    _
  $region3: #{tpu_custom_call.1} parent=0 // pred_check_branch
    %13 = sbr.rel (0) target = $region5
  $region4: #{tpu_custom_call.1} parent=0 // pred_region
    _
  $region5: #{tpu_custom_call.1} parent=0 // pred_fallthru
    _
  // Predicated region
  $region6: #{tpu_custom_call.1} parent=0 // pred_check
    _
  $region7: #{tpu_custom_call.1} parent=0 // pred_check_branch
    %15 = sbr.rel (0) target = $region9
  $region8: #{tpu_custom_call.1} parent=0 // pred_region
    _
  $region9: #{tpu_custom_call.1} parent=0 // pred_fallthru
    _
  // Predicated region
  $region10: #{tpu_custom_call.1} parent=0 // pred_check
    _
  $region11: #{tpu_custom_call.1} parent=0 // pred_check_branch
    %17 = sbr.rel (0) target = $region13
  $region12: #{tpu_custom_call.1} parent=0 // pred_region
    _
  $region13: #{tpu_custom_call.1} parent=0 // pred_fallthru
    _
  // Predicated region
  $region14: #{tpu_custom_call.1} parent=0 // pred_check
    _
  $region15: #{tpu_custom_call.1} parent=0 // pred_check_branch
    %19 = sbr.rel (0) target = $region17
  $region16: #{tpu_custom_call.1} parent=0 // pred_region
    _
  $region17: #{tpu_custom_call.1} parent=0 // pred_fallthru
    _
  // Predicated region
  $region18: #{tpu_custom_call.1} parent=0 // pred_check
    _
  $region19: #{tpu_custom_call.1} parent=0 // pred_check_branch
    %21 = sbr.rel (0) target = $region21
  $region20: #{tpu_custom_call.1} parent=0 // pred_region
    _
  $region21: #{tpu_custom_call.1} parent=0 // pred_fallthru
    _
  // Predicated region
  $region22: #{tpu_custom_call.1} parent=0 // pred_check
    _
  $region23: #{tpu_custom_call.1} parent=0 // pred_check_branch
    %23 = sbr.rel (0) target = $region25
  $region24: #{tpu_custom_call.1} parent=0 // pred_region
    _
  $region25: #{tpu_custom_call.1} parent=0 // pred_fallthru
    _
  // Predicated region
  $region26: #{tpu_custom_call.1} parent=0 // pred_check
    _
  $region27: #{tpu_custom_call.1} parent=0 // pred_check_branch
    %25 = sbr.rel (0) target = $region29
  $region28: #{tpu_custom_call.1} parent=0 // pred_region
    _
  $region29: #{tpu_custom_call.1} parent=0 // pred_fallthru
    _
  %v27 = vld [vmem:[%s0] sm:$0xff]
  %v28 = vld [vmem:[%s0 + $0x8] sm:$0xff]
  %v29 = vld [vmem:[%s0 + $0x10] sm:$0xff]
  %v30 = vld [vmem:[%s0 + $0x18] sm:$0xff]
  %v31 = vld [vmem:[%s0 + $0x20] sm:$0xff]
  %v32 = vld [vmem:[%s0 + $0x28] sm:$0xff]
  %v33 = vld [vmem:[%s0 + $0x30] sm:$0xff]
  %v34 = vld [vmem:[%s0 + $0x38] sm:$0xff]
  %v35 = vld [vmem:[%s0 + $0x40] sm:$0xff]
  %v36 = vld [vmem:[%s0 + $0x48] sm:$0xff]
  %v37 = vld [vmem:[%s0 + $0x50] sm:$0xff]
  %v38 = vld [vmem:[%s0 + $0x58] sm:$0xff]
  %v39 = vld [vmem:[%s0 + $0x60] sm:$0xff]
  %v40 = vld [vmem:[%s0 + $0x68] sm:$0xff]
  %v41 = vld [vmem:[%s0 + $0x70] sm:$0xff]
  %v42 = vld [vmem:[%s0 + $0x78] sm:$0xff]
  %v43 = vld [vmem:[%s0 + $0x80] sm:$0xff]
  %v44 = vld [vmem:[%s0 + $0x88] sm:$0xff]
  %v45 = vld [vmem:[%s0 + $0x90] sm:$0xff]
  %v46 = vld [vmem:[%s0 + $0x98] sm:$0xff]
  %v47 = vld [vmem:[%s0 + $0xa0] sm:$0xff]
  %v48 = vld [vmem:[%s0 + $0xa8] sm:$0xff]
  %v49 = vld [vmem:[%s0 + $0xb0] sm:$0xff]
  %v50 = vld [vmem:[%s0 + $0xb8] sm:$0xff]
  %v51 = vld [vmem:[%s0 + $0xc0] sm:$0xff]
  %v52 = vld [vmem:[%s0 + $0xc8] sm:$0xff]
  %v53 = vld [vmem:[%s0 + $0xd0] sm:$0xff]
  %v54 = vld [vmem:[%s0 + $0xd8] sm:$0xff]
  %v55 = vld [vmem:[%s0 + $0xe0] sm:$0xff]
  %v56 = vld [vmem:[%s0 + $0xe8] sm:$0xff]
  %v57 = vld [vmem:[%s0 + $0xf0] sm:$0xff]
  %v58 = vld [vmem:[%s0 + $0xf8] sm:$0xff]
  %v59 = vld [vmem:[%s0 + $0x100] sm:$0xff]
  %v60 = vld [vmem:[%s0 + $0x108] sm:$0xff]
  %v61 = vld [vmem:[%s0 + $0x110] sm:$0xff]
  %v62 = vld [vmem:[%s0 + $0x118] sm:$0xff]
  %v63 = vld [vmem:[%s0 + $0x120] sm:$0xff]
  %v64 = vld [vmem:[%s0 + $0x128] sm:$0xff]
  %v65 = vld [vmem:[%s0 + $0x130] sm:$0xff]
  %v66 = vld [vmem:[%s0 + $0x138] sm:$0xff]
  %v67 = vld [vmem:[%s0 + $0x140] sm:$0xff]
  %v68 = vld [vmem:[%s0 + $0x148] sm:$0xff]
  %v69 = vld [vmem:[%s0 + $0x150] sm:$0xff]
  %v70 = vld [vmem:[%s0 + $0x158] sm:$0xff]
  %v71 = vld [vmem:[%s0 + $0x160] sm:$0xff]
  %v72 = vld [vmem:[%s0 + $0x168] sm:$0xff]
  %v73 = vld [vmem:[%s0 + $0x170] sm:$0xff]
  %v74 = vld [vmem:[%s0 + $0x178] sm:$0xff]
  %v75 = vld [vmem:[%s0 + $0x180] sm:$0xff]
  %v76 = vld [vmem:[%s0 + $0x188] sm:$0xff]
  %v77 = vld [vmem:[%s0 + $0x190] sm:$0xff]
  %v78 = vld [vmem:[%s0 + $0x198] sm:$0xff]
  %v79 = vld [vmem:[%s0 + $0x1a0] sm:$0xff]
  %v80 = vld [vmem:[%s0 + $0x1a8] sm:$0xff]
  %v81 = vld [vmem:[%s0 + $0x1b0] sm:$0xff]
  %v82 = vld [vmem:[%s0 + $0x1b8] sm:$0xff]
  %v83 = vld [vmem:[%s0 + $0x1c0] sm:$0xff]
  %v84 = vld [vmem:[%s0 + $0x1c8] sm:$0xff]
  %v85 = vld [vmem:[%s0 + $0x1d0] sm:$0xff]
  %v86 = vld [vmem:[%s0 + $0x1d8] sm:$0xff]
  %v87 = vld [vmem:[%s0 + $0x1e0] sm:$0xff]
  %v88 = vld [vmem:[%s0 + $0x1e8] sm:$0xff]
  %v89 = vld [vmem:[%s0 + $0x1f0] sm:$0xff]
  %v90 = vld [vmem:[%s0 + $0x1f8] sm:$0xff]
  %v91 = vpack.c.bf16 %v28, %v27
  %v92 = vpack.c.bf16 %v30, %v29
  %v93 = vpack.c.bf16 %v32, %v31
  %v94 = vpack.c.bf16 %v34, %v33
  %v95 = vpack.c.bf16 %v36, %v35
  %v96 = vpack.c.bf16 %v38, %v37
  %v97 = vpack.c.bf16 %v40, %v39
  %v98 = vpack.c.bf16 %v42, %v41
  %v99 = vpack.c.bf16 %v44, %v43
  %v100 = vpack.c.bf16 %v46, %v45
  %v101 = vpack.c.bf16 %v48, %v47
  %v102 = vpack.c.bf16 %v50, %v49
  %v103 = vpack.c.bf16 %v52, %v51
  %v104 = vpack.c.bf16 %v54, %v53
  %v105 = vpack.c.bf16 %v56, %v55
  %v106 = vpack.c.bf16 %v58, %v57
  %v107 = vpack.c.bf16 %v60, %v59
  %v108 = vpack.c.bf16 %v62, %v61
  %v109 = vpack.c.bf16 %v64, %v63
  %v110 = vpack.c.bf16 %v66, %v65
  %v111 = vpack.c.bf16 %v68, %v67
  %v112 = vpack.c.bf16 %v70, %v69
  %v113 = vpack.c.bf16 %v72, %v71
  %v114 = vpack.c.bf16 %v74, %v73
  %v115 = vpack.c.bf16 %v76, %v75
  %v116 = vpack.c.bf16 %v78, %v77
  %v117 = vpack.c.bf16 %v80, %v79
  %v118 = vpack.c.bf16 %v82, %v81
  %v119 = vpack.c.bf16 %v84, %v83
  %v120 = vpack.c.bf16 %v86, %v85
  %v121 = vpack.c.bf16 %v88, %v87
  %v122 = vpack.c.bf16 %v90, %v89
  %v123 = vld [vmem:[%s1] sm:$0xf]
  %v124 = vld [vmem:[%s2] sm:$0x1]
  %v126 = vperm.slane %v124, 0
  %vm128 = vcmask 64512
  %v130 = vsel %vm128, %v91, 0
  %v133 = vsel %vm128, %v92, 0
  %v136 = vsel %vm128, %v93, 0
  %v139 = vsel %vm128, %v94, 0
  %v142 = vsel %vm128, %v95, 0
  %v145 = vsel %vm128, %v96, 0
  %v148 = vsel %vm128, %v97, 0
  %v151 = vsel %vm128, %v98, 0
  %v154 = vsel %vm128, %v99, 0
  %v157 = vsel %vm128, %v100, 0
  %v160 = vsel %vm128, %v101, 0
  %v163 = vsel %vm128, %v102, 0
  %v166 = vsel %vm128, %v103, 0
  %v169 = vsel %vm128, %v104, 0
  %v172 = vsel %vm128, %v105, 0
  %v175 = vsel %vm128, %v106, 0
  %v178 = vsel %vm128, %v107, 0
  %v181 = vsel %vm128, %v108, 0
  %v184 = vsel %vm128, %v109, 0
  %v187 = vsel %vm128, %v110, 0
  %v190 = vsel %vm128, %v111, 0
  %v193 = vsel %vm128, %v112, 0
  %v196 = vsel %vm128, %v113, 0
  %v199 = vsel %vm128, %v114, 0
  %v202 = vsel %vm128, %v115, 0
  %v205 = vsel %vm128, %v116, 0
  %v208 = vsel %vm128, %v117, 0
  %v211 = vsel %vm128, %v118, 0
  %v214 = vsel %vm128, %v119, 0
  %v217 = vsel %vm128, %v120, 0
  %v220 = vsel %vm128, %v121, 0
  %v223 = vsel %vm128, %v122, 0
  %vm225 = vcmask 1043456
  %v227 = vsel %vm225, %v123, 0
  %229 = vmatpush.bf16.msra.mxu0 0
  %230 = vmatpush.bf16.msra.mxu0 0
  %231 = vmatpush.bf16.msra.mxu0 0
  %232 = vmatpush.bf16.msra.mxu0 0
  %233 = vmatpush.bf16.msra.mxu0 0
  %234 = vmatpush.bf16.msra.mxu0 0
  %235 = vmatpush.bf16.msra.mxu0 0
  %236 = vmatpush.bf16.msra.mxu0 %v227
  %237 = vmatmul.bf16.gmra.mxu0 %v130
  %v238 = vpop.f32.mrf.mxu0
  %v239 = vadd.f32 %v126, %v238
  %v240 = vpop.f32.mrf.mxu0
  %v241 = vadd.f32 %v126, %v240
  %242 = vmatmul.bf16.gmra.mxu0 %v133
  %v243 = vpop.f32.mrf.mxu0
  %v244 = vadd.f32 %v126, %v243
  %v245 = vpop.f32.mrf.mxu0
  %v246 = vadd.f32 %v126, %v245
  %247 = vmatmul.bf16.gmra.mxu0 %v136
  %v248 = vpop.f32.mrf.mxu0
  %v249 = vadd.f32 %v126, %v248
  %v250 = vpop.f32.mrf.mxu0
  %v251 = vadd.f32 %v126, %v250
  %252 = vmatmul.bf16.gmra.mxu0 %v139
  %v253 = vpop.f32.mrf.mxu0
  %v254 = vadd.f32 %v126, %v253
  %v255 = vpop.f32.mrf.mxu0
  %v256 = vadd.f32 %v126, %v255
  %257 = vmatmul.bf16.gmra.mxu0 %v142
  %v258 = vpop.f32.mrf.mxu0
  %v259 = vadd.f32 %v126, %v258
  %v260 = vpop.f32.mrf.mxu0
  %v261 = vadd.f32 %v126, %v260
  %262 = vmatmul.bf16.gmra.mxu0 %v145
  %v263 = vpop.f32.mrf.mxu0
  %v264 = vadd.f32 %v126, %v263
  %v265 = vpop.f32.mrf.mxu0
  %v266 = vadd.f32 %v126, %v265
  %267 = vmatmul.bf16.gmra.mxu0 %v148
  %v268 = vpop.f32.mrf.mxu0
  %v269 = vadd.f32 %v126, %v268
  %v270 = vpop.f32.mrf.mxu0
  %v271 = vadd.f32 %v126, %v270
  %272 = vmatmul.bf16.gmra.mxu0 %v151
  %v273 = vpop.f32.mrf.mxu0
  %v274 = vadd.f32 %v126, %v273
  %v275 = vpop.f32.mrf.mxu0
  %v276 = vadd.f32 %v126, %v275
  %277 = vmatmul.bf16.gmra.mxu0 %v154
  %v278 = vpop.f32.mrf.mxu0
  %v279 = vadd.f32 %v126, %v278
  %v280 = vpop.f32.mrf.mxu0
  %v281 = vadd.f32 %v126, %v280
  %282 = vmatmul.bf16.gmra.mxu0 %v157
  %v283 = vpop.f32.mrf.mxu0
  %v284 = vadd.f32 %v126, %v283
  %v285 = vpop.f32.mrf.mxu0
  %v286 = vadd.f32 %v126, %v285
  %287 = vmatmul.bf16.gmra.mxu0 %v160
  %v288 = vpop.f32.mrf.mxu0
  %v289 = vadd.f32 %v126, %v288
  %v290 = vpop.f32.mrf.mxu0
  %v291 = vadd.f32 %v126, %v290
  %292 = vmatmul.bf16.gmra.mxu0 %v163
  %v293 = vpop.f32.mrf.mxu0
  %v294 = vadd.f32 %v126, %v293
  %v295 = vpop.f32.mrf.mxu0
  %v296 = vadd.f32 %v126, %v295
  %297 = vmatmul.bf16.gmra.mxu0 %v166
  %v298 = vpop.f32.mrf.mxu0
  %v299 = vadd.f32 %v126, %v298
  %v300 = vpop.f32.mrf.mxu0
  %v301 = vadd.f32 %v126, %v300
  %302 = vmatmul.bf16.gmra.mxu0 %v169
  %v303 = vpop.f32.mrf.mxu0
  %v304 = vadd.f32 %v126, %v303
  %v305 = vpop.f32.mrf.mxu0
  %v306 = vadd.f32 %v126, %v305
  %307 = vmatmul.bf16.gmra.mxu0 %v172
  %v308 = vpop.f32.mrf.mxu0
  %v309 = vadd.f32 %v126, %v308
  %v310 = vpop.f32.mrf.mxu0
  %v311 = vadd.f32 %v126, %v310
  %312 = vmatmul.bf16.gmra.mxu0 %v175
  %v313 = vpop.f32.mrf.mxu0
  %v314 = vadd.f32 %v126, %v313
  %v315 = vpop.f32.mrf.mxu0
  %v316 = vadd.f32 %v126, %v315
  %317 = vmatmul.bf16.gmra.mxu0 %v178
  %v318 = vpop.f32.mrf.mxu0
  %v319 = vadd.f32 %v126, %v318
  %v320 = vpop.f32.mrf.mxu0
  %v321 = vadd.f32 %v126, %v320
  %322 = vmatmul.bf16.gmra.mxu0 %v181
  %v323 = vpop.f32.mrf.mxu0
  %v324 = vadd.f32 %v126, %v323
  %v325 = vpop.f32.mrf.mxu0
  %v326 = vadd.f32 %v126, %v325
  %327 = vmatmul.bf16.gmra.mxu0 %v184
  %v328 = vpop.f32.mrf.mxu0
  %v329 = vadd.f32 %v126, %v328
  %v330 = vpop.f32.mrf.mxu0
  %v331 = vadd.f32 %v126, %v330
  %332 = vmatmul.bf16.gmra.mxu0 %v187
  %v333 = vpop.f32.mrf.mxu0
  %v334 = vadd.f32 %v126, %v333
  %v335 = vpop.f32.mrf.mxu0
  %v336 = vadd.f32 %v126, %v335
  %337 = vmatmul.bf16.gmra.mxu0 %v190
  %v338 = vpop.f32.mrf.mxu0
  %v339 = vadd.f32 %v126, %v338
  %v340 = vpop.f32.mrf.mxu0
  %v341 = vadd.f32 %v126, %v340
  %342 = vmatmul.bf16.gmra.mxu0 %v193
  %v343 = vpop.f32.mrf.mxu0
  %v344 = vadd.f32 %v126, %v343
  %v345 = vpop.f32.mrf.mxu0
  %v346 = vadd.f32 %v126, %v345
  %347 = vmatmul.bf16.gmra.mxu0 %v196
  %v348 = vpop.f32.mrf.mxu0
  %v349 = vadd.f32 %v126, %v348
  %v350 = vpop.f32.mrf.mxu0
  %v351 = vadd.f32 %v126, %v350
  %352 = vmatmul.bf16.gmra.mxu0 %v199
  %v353 = vpop.f32.mrf.mxu0
  %v354 = vadd.f32 %v126, %v353
  %v355 = vpop.f32.mrf.mxu0
  %v356 = vadd.f32 %v126, %v355
  %357 = vmatmul.bf16.gmra.mxu0 %v202
  %v358 = vpop.f32.mrf.mxu0
  %v359 = vadd.f32 %v126, %v358
  %v360 = vpop.f32.mrf.mxu0
  %v361 = vadd.f32 %v126, %v360
  %362 = vmatmul.bf16.gmra.mxu0 %v205
  %v363 = vpop.f32.mrf.mxu0
  %v364 = vadd.f32 %v126, %v363
  %v365 = vpop.f32.mrf.mxu0
  %v366 = vadd.f32 %v126, %v365
  %367 = vmatmul.bf16.gmra.mxu0 %v208
  %v368 = vpop.f32.mrf.mxu0
  %v369 = vadd.f32 %v126, %v368
  %v370 = vpop.f32.mrf.mxu0
  %v371 = vadd.f32 %v126, %v370
  %372 = vmatmul.bf16.gmra.mxu0 %v211
  %v373 = vpop.f32.mrf.mxu0
  %v374 = vadd.f32 %v126, %v373
  %v375 = vpop.f32.mrf.mxu0
  %v376 = vadd.f32 %v126, %v375
  %377 = vmatmul.bf16.gmra.mxu0 %v214
  %v378 = vpop.f32.mrf.mxu0
  %v379 = vadd.f32 %v126, %v378
  %v380 = vpop.f32.mrf.mxu0
  %v381 = vadd.f32 %v126, %v380
  %382 = vmatmul.bf16.gmra.mxu0 %v217
  %v383 = vpop.f32.mrf.mxu0
  %v384 = vadd.f32 %v126, %v383
  %v385 = vpop.f32.mrf.mxu0
  %v386 = vadd.f32 %v126, %v385
  %387 = vmatmul.bf16.gmra.mxu0 %v220
  %v388 = vpop.f32.mrf.mxu0
  %v389 = vadd.f32 %v126, %v388
  %v390 = vpop.f32.mrf.mxu0
  %v391 = vadd.f32 %v126, %v390
  %392 = vmatmul.bf16.gmra.mxu0 %v223
  %v393 = vpop.f32.mrf.mxu0
  %v394 = vadd.f32 %v126, %v393
  %v395 = vpop.f32.mrf.mxu0
  %v396 = vadd.f32 %v126, %v395
  %397 = vdwg.mxu0
  %v398 = vmul.f32 %v239, 0.01
  %v399 = vmul.f32 %v241, 0.01
  %v400 = vmul.f32 %v244, 0.01
  %v401 = vmul.f32 %v246, 0.01
  %v402 = vmul.f32 %v249, 0.01
  %v403 = vmul.f32 %v251, 0.01
  %v404 = vmul.f32 %v254, 0.01
  %v405 = vmul.f32 %v256, 0.01
  %v406 = vmul.f32 %v259, 0.01
  %v407 = vmul.f32 %v261, 0.01
  %v408 = vmul.f32 %v264, 0.01
  %v409 = vmul.f32 %v266, 0.01
  %v410 = vmul.f32 %v269, 0.01
  %v411 = vmul.f32 %v271, 0.01
  %v412 = vmul.f32 %v274, 0.01
  %v413 = vmul.f32 %v276, 0.01
  %v414 = vmul.f32 %v279, 0.01
  %v415 = vmul.f32 %v281, 0.01
  %v416 = vmul.f32 %v284, 0.01
  %v417 = vmul.f32 %v286, 0.01
  %v418 = vmul.f32 %v289, 0.01
  %v419 = vmul.f32 %v291, 0.01
  %v420 = vmul.f32 %v294, 0.01
  %v421 = vmul.f32 %v296, 0.01
  %v422 = vmul.f32 %v299, 0.01
  %v423 = vmul.f32 %v301, 0.01
  %v424 = vmul.f32 %v304, 0.01
  %v425 = vmul.f32 %v306, 0.01
  %v426 = vmul.f32 %v309, 0.01
  %v427 = vmul.f32 %v311, 0.01
  %v428 = vmul.f32 %v314, 0.01
  %v429 = vmul.f32 %v316, 0.01
  %v430 = vmul.f32 %v319, 0.01
  %v431 = vmul.f32 %v321, 0.01
  %v432 = vmul.f32 %v324, 0.01
  %v433 = vmul.f32 %v326, 0.01
  %v434 = vmul.f32 %v329, 0.01
  %v435 = vmul.f32 %v331, 0.01
  %v436 = vmul.f32 %v334, 0.01
  %v437 = vmul.f32 %v336, 0.01
  %v438 = vmul.f32 %v339, 0.01
  %v439 = vmul.f32 %v341, 0.01
  %v440 = vmul.f32 %v344, 0.01
  %v441 = vmul.f32 %v346, 0.01
  %v442 = vmul.f32 %v349, 0.01
  %v443 = vmul.f32 %v351, 0.01
  %v444 = vmul.f32 %v354, 0.01
  %v445 = vmul.f32 %v356, 0.01
  %v446 = vmul.f32 %v359, 0.01
  %v447 = vmul.f32 %v361, 0.01
  %v448 = vmul.f32 %v364, 0.01
  %v449 = vmul.f32 %v366, 0.01
  %v450 = vmul.f32 %v369, 0.01
  %v451 = vmul.f32 %v371, 0.01
  %v452 = vmul.f32 %v374, 0.01
  %v453 = vmul.f32 %v376, 0.01
  %v454 = vmul.f32 %v379, 0.01
  %v455 = vmul.f32 %v381, 0.01
  %v456 = vmul.f32 %v384, 0.01
  %v457 = vmul.f32 %v386, 0.01
  %v458 = vmul.f32 %v389, 0.01
  %v459 = vmul.f32 %v391, 0.01
  %v460 = vmul.f32 %v394, 0.01
  %v461 = vmul.f32 %v396, 0.01
  %v462 = vmax.f32 %v239, %v398
  %v463 = vmax.f32 %v241, %v399
  %v464 = vmax.f32 %v244, %v400
  %v465 = vmax.f32 %v246, %v401
  %v466 = vmax.f32 %v249, %v402
  %v467 = vmax.f32 %v251, %v403
  %v468 = vmax.f32 %v254, %v404
  %v469 = vmax.f32 %v256, %v405
  %v470 = vmax.f32 %v259, %v406
  %v471 = vmax.f32 %v261, %v407
  %v472 = vmax.f32 %v264, %v408
  %v473 = vmax.f32 %v266, %v409
  %v474 = vmax.f32 %v269, %v410
  %v475 = vmax.f32 %v271, %v411
  %v476 = vmax.f32 %v274, %v412
  %v477 = vmax.f32 %v276, %v413
  %v478 = vmax.f32 %v279, %v414
  %v479 = vmax.f32 %v281, %v415
  %v480 = vmax.f32 %v284, %v416
  %v481 = vmax.f32 %v286, %v417
  %v482 = vmax.f32 %v289, %v418
  %v483 = vmax.f32 %v291, %v419
  %v484 = vmax.f32 %v294, %v420
  %v485 = vmax.f32 %v296, %v421
  %v486 = vmax.f32 %v299, %v422
  %v487 = vmax.f32 %v301, %v423
  %v488 = vmax.f32 %v304, %v424
  %v489 = vmax.f32 %v306, %v425
  %v490 = vmax.f32 %v309, %v426
  %v491 = vmax.f32 %v311, %v427
  %v492 = vmax.f32 %v314, %v428
  %v493 = vmax.f32 %v316, %v429
  %v494 = vmax.f32 %v319, %v430
  %v495 = vmax.f32 %v321, %v431
  %v496 = vmax.f32 %v324, %v432
  %v497 = vmax.f32 %v326, %v433
  %v498 = vmax.f32 %v329, %v434
  %v499 = vmax.f32 %v331, %v435
  %v500 = vmax.f32 %v334, %v436
  %v501 = vmax.f32 %v336, %v437
  %v502 = vmax.f32 %v339, %v438
  %v503 = vmax.f32 %v341, %v439
  %v504 = vmax.f32 %v344, %v440
  %v505 = vmax.f32 %v346, %v441
  %v506 = vmax.f32 %v349, %v442
  %v507 = vmax.f32 %v351, %v443
  %v508 = vmax.f32 %v354, %v444
  %v509 = vmax.f32 %v356, %v445
  %v510 = vmax.f32 %v359, %v446
  %v511 = vmax.f32 %v361, %v447
  %v512 = vmax.f32 %v364, %v448
  %v513 = vmax.f32 %v366, %v449
  %v514 = vmax.f32 %v369, %v450
  %v515 = vmax.f32 %v371, %v451
  %v516 = vmax.f32 %v374, %v452
  %v517 = vmax.f32 %v376, %v453
  %v518 = vmax.f32 %v379, %v454
  %v519 = vmax.f32 %v381, %v455
  %v520 = vmax.f32 %v384, %v456
  %v521 = vmax.f32 %v386, %v457
  %v522 = vmax.f32 %v389, %v458
  %v523 = vmax.f32 %v391, %v459
  %v524 = vmax.f32 %v394, %v460
  %v525 = vmax.f32 %v396, %v461
  %v526 = vpack.c.bf16 %v463, %v462
  %v527 = vpack.c.bf16 %v465, %v464
  %v528 = vpack.c.bf16 %v467, %v466
  %v529 = vpack.c.bf16 %v469, %v468
  %v530 = vpack.c.bf16 %v471, %v470
  %v531 = vpack.c.bf16 %v473, %v472
  %v532 = vpack.c.bf16 %v475, %v474
  %v533 = vpack.c.bf16 %v477, %v476
  %v534 = vpack.c.bf16 %v479, %v478
  %v535 = vpack.c.bf16 %v481, %v480
  %v536 = vpack.c.bf16 %v483, %v482
  %v537 = vpack.c.bf16 %v485, %v484
  %v538 = vpack.c.bf16 %v487, %v486
  %v539 = vpack.c.bf16 %v489, %v488
  %v540 = vpack.c.bf16 %v491, %v490
  %v541 = vpack.c.bf16 %v493, %v492
  %v542 = vpack.c.bf16 %v495, %v494
  %v543 = vpack.c.bf16 %v497, %v496
  %v544 = vpack.c.bf16 %v499, %v498
  %v545 = vpack.c.bf16 %v501, %v500
  %v546 = vpack.c.bf16 %v503, %v502
  %v547 = vpack.c.bf16 %v505, %v504
  %v548 = vpack.c.bf16 %v507, %v506
  %v549 = vpack.c.bf16 %v509, %v508
  %v550 = vpack.c.bf16 %v511, %v510
  %v551 = vpack.c.bf16 %v513, %v512
  %v552 = vpack.c.bf16 %v515, %v514
  %v553 = vpack.c.bf16 %v517, %v516
  %v554 = vpack.c.bf16 %v519, %v518
  %v555 = vpack.c.bf16 %v521, %v520
  %v556 = vpack.c.bf16 %v523, %v522
  %v557 = vpack.c.bf16 %v525, %v524
  %v558 = vld [vmem:[%s3] sm:$0xf]
  %v559 = vld [vmem:[%s3 + $0x4] sm:$0xf]
  %v560 = vld [vmem:[%s3 + $0x8] sm:$0xf]
  %v561 = vld [vmem:[%s3 + $0xc] sm:$0xf]
  %v562 = vld [vmem:[%s3 + $0x10] sm:$0xf]
  %v563 = vld [vmem:[%s3 + $0x14] sm:$0xf]
  %v564 = vld [vmem:[%s3 + $0x18] sm:$0xf]
  %v565 = vld [vmem:[%s3 + $0x1c] sm:$0xf]
  %v566 = vld [vmem:[%s3 + $0x20] sm:$0xf]
  %v567 = vld [vmem:[%s3 + $0x24] sm:$0xf]
  %v568 = vld [vmem:[%s3 + $0x28] sm:$0xf]
  %v569 = vld [vmem:[%s3 + $0x2c] sm:$0xf]
  %v570 = vld [vmem:[%s3 + $0x30] sm:$0xf]
  %v571 = vld [vmem:[%s3 + $0x34] sm:$0xf]
  %v572 = vld [vmem:[%s3 + $0x38] sm:$0xf]
  %v573 = vld [vmem:[%s3 + $0x3c] sm:$0xf]
  %v574 = vld [vmem:[%s4] sm:$0x1]
  %v576 = vperm.slane %v574, 0
  %v594 = vunpack.c.l.b16 %v558
  %v595 = vunpack.c.l.b16 %v559
  %v596 = vunpack.c.l.b16 %v560
  %v597 = vunpack.c.l.b16 %v561
  %v598 = vunpack.c.l.b16 %v562
  %v599 = vunpack.c.l.b16 %v563
  %v600 = vunpack.c.l.b16 %v564
  %v601 = vunpack.c.l.b16 %v565
  %v602 = vunpack.c.l.b16 %v566
  %v603 = vunpack.c.l.b16 %v567
  %v604 = vunpack.c.l.b16 %v568
  %v605 = vunpack.c.l.b16 %v569
  %v606 = vunpack.c.l.b16 %v570
  %v607 = vunpack.c.l.b16 %v571
  %v608 = vunpack.c.l.b16 %v572
  %v609 = vunpack.c.l.b16 %v573
  %v610 = vpack.c.b16 %v595, %v594
  %v611 = vpack.c.b16 %v597, %v596
  %v612 = vpack.c.b16 %v599, %v598
  %v613 = vpack.c.b16 %v601, %v600
  %v614 = vpack.c.b16 %v603, %v602
  %v615 = vpack.c.b16 %v605, %v604
  %v616 = vpack.c.b16 %v607, %v606
  %v617 = vpack.c.b16 %v609, %v608
  %626 = vmatpush.bf16.msra.mxu0 %v617
  %627 = vmatpush.bf16.msra.mxu0 %v616
  %628 = vmatpush.bf16.msra.mxu0 %v615
  %629 = vmatpush.bf16.msra.mxu0 %v614
  %630 = vmatpush.bf16.msra.mxu0 %v613
  %631 = vmatpush.bf16.msra.mxu0 %v612
  %632 = vmatpush.bf16.msra.mxu0 %v611
  %633 = vmatpush.bf16.msra.mxu0 %v610
  %634 = vmatmul.bf16.gmra.mxu0 %v526
  %v635 = vpop.f32.mrf.mxu0
  %v636 = vadd.f32 %v576, %v635
  %v637 = vpop.f32.mrf.mxu0
  %v638 = vadd.f32 %v576, %v637
  %639 = vmatmul.bf16.gmra.mxu0 %v527
  %v640 = vpop.f32.mrf.mxu0
  %v641 = vadd.f32 %v576, %v640
  %v642 = vpop.f32.mrf.mxu0
  %v643 = vadd.f32 %v576, %v642
  %644 = vmatmul.bf16.gmra.mxu0 %v528
  %v645 = vpop.f32.mrf.mxu0
  %v646 = vadd.f32 %v576, %v645
  %v647 = vpop.f32.mrf.mxu0
  %v648 = vadd.f32 %v576, %v647
  %649 = vmatmul.bf16.gmra.mxu0 %v529
  %v650 = vpop.f32.mrf.mxu0
  %v651 = vadd.f32 %v576, %v650
  %v652 = vpop.f32.mrf.mxu0
  %v653 = vadd.f32 %v576, %v652
  %654 = vmatmul.bf16.gmra.mxu0 %v530
  %v655 = vpop.f32.mrf.mxu0
  %v656 = vadd.f32 %v576, %v655
  %v657 = vpop.f32.mrf.mxu0
  %v658 = vadd.f32 %v576, %v657
  %659 = vmatmul.bf16.gmra.mxu0 %v531
  %v660 = vpop.f32.mrf.mxu0
  %v661 = vadd.f32 %v576, %v660
  %v662 = vpop.f32.mrf.mxu0
  %v663 = vadd.f32 %v576, %v662
  %664 = vmatmul.bf16.gmra.mxu0 %v532
  %v665 = vpop.f32.mrf.mxu0
  %v666 = vadd.f32 %v576, %v665
  %v667 = vpop.f32.mrf.mxu0
  %v668 = vadd.f32 %v576, %v667
  %669 = vmatmul.bf16.gmra.mxu0 %v533
  %v670 = vpop.f32.mrf.mxu0
  %v671 = vadd.f32 %v576, %v670
  %v672 = vpop.f32.mrf.mxu0
  %v673 = vadd.f32 %v576, %v672
  %674 = vmatmul.bf16.gmra.mxu0 %v534
  %v675 = vpop.f32.mrf.mxu0
  %v676 = vadd.f32 %v576, %v675
  %v677 = vpop.f32.mrf.mxu0
  %v678 = vadd.f32 %v576, %v677
  %679 = vmatmul.bf16.gmra.mxu0 %v535
  %v680 = vpop.f32.mrf.mxu0
  %v681 = vadd.f32 %v576, %v680
  %v682 = vpop.f32.mrf.mxu0
  %v683 = vadd.f32 %v576, %v682
  %684 = vmatmul.bf16.gmra.mxu0 %v536
  %v685 = vpop.f32.mrf.mxu0
  %v686 = vadd.f32 %v576, %v685
  %v687 = vpop.f32.mrf.mxu0
  %v688 = vadd.f32 %v576, %v687
  %689 = vmatmul.bf16.gmra.mxu0 %v537
  %v690 = vpop.f32.mrf.mxu0
  %v691 = vadd.f32 %v576, %v690
  %v692 = vpop.f32.mrf.mxu0
  %v693 = vadd.f32 %v576, %v692
  %694 = vmatmul.bf16.gmra.mxu0 %v538
  %v695 = vpop.f32.mrf.mxu0
  %v696 = vadd.f32 %v576, %v695
  %v697 = vpop.f32.mrf.mxu0
  %v698 = vadd.f32 %v576, %v697
  %699 = vmatmul.bf16.gmra.mxu0 %v539
  %v700 = vpop.f32.mrf.mxu0
  %v701 = vadd.f32 %v576, %v700
  %v702 = vpop.f32.mrf.mxu0
  %v703 = vadd.f32 %v576, %v702
  %704 = vmatmul.bf16.gmra.mxu0 %v540
  %v705 = vpop.f32.mrf.mxu0
  %v706 = vadd.f32 %v576, %v705
  %v707 = vpop.f32.mrf.mxu0
  %v708 = vadd.f32 %v576, %v707
  %709 = vmatmul.bf16.gmra.mxu0 %v541
  %v710 = vpop.f32.mrf.mxu0
  %v711 = vadd.f32 %v576, %v710
  %v712 = vpop.f32.mrf.mxu0
  %v713 = vadd.f32 %v576, %v712
  %714 = vmatmul.bf16.gmra.mxu0 %v542
  %v715 = vpop.f32.mrf.mxu0
  %v716 = vadd.f32 %v576, %v715
  %v717 = vpop.f32.mrf.mxu0
  %v718 = vadd.f32 %v576, %v717
  %719 = vmatmul.bf16.gmra.mxu0 %v543
  %v720 = vpop.f32.mrf.mxu0
  %v721 = vadd.f32 %v576, %v720
  %v722 = vpop.f32.mrf.mxu0
  %v723 = vadd.f32 %v576, %v722
  %724 = vmatmul.bf16.gmra.mxu0 %v544
  %v725 = vpop.f32.mrf.mxu0
  %v726 = vadd.f32 %v576, %v725
  %v727 = vpop.f32.mrf.mxu0
  %v728 = vadd.f32 %v576, %v727
  %729 = vmatmul.bf16.gmra.mxu0 %v545
  %v730 = vpop.f32.mrf.mxu0
  %v731 = vadd.f32 %v576, %v730
  %v732 = vpop.f32.mrf.mxu0
  %v733 = vadd.f32 %v576, %v732
  %734 = vmatmul.bf16.gmra.mxu0 %v546
  %v735 = vpop.f32.mrf.mxu0
  %v736 = vadd.f32 %v576, %v735
  %v737 = vpop.f32.mrf.mxu0
  %v738 = vadd.f32 %v576, %v737
  %739 = vmatmul.bf16.gmra.mxu0 %v547
  %v740 = vpop.f32.mrf.mxu0
  %v741 = vadd.f32 %v576, %v740
  %v742 = vpop.f32.mrf.mxu0
  %v743 = vadd.f32 %v576, %v742
  %744 = vmatmul.bf16.gmra.mxu0 %v548
  %v745 = vpop.f32.mrf.mxu0
  %v746 = vadd.f32 %v576, %v745
  %v747 = vpop.f32.mrf.mxu0
  %v748 = vadd.f32 %v576, %v747
  %749 = vmatmul.bf16.gmra.mxu0 %v549
  %v750 = vpop.f32.mrf.mxu0
  %v751 = vadd.f32 %v576, %v750
  %v752 = vpop.f32.mrf.mxu0
  %v753 = vadd.f32 %v576, %v752
  %754 = vmatmul.bf16.gmra.mxu0 %v550
  %v755 = vpop.f32.mrf.mxu0
  %v756 = vadd.f32 %v576, %v755
  %v757 = vpop.f32.mrf.mxu0
  %v758 = vadd.f32 %v576, %v757
  %759 = vmatmul.bf16.gmra.mxu0 %v551
  %v760 = vpop.f32.mrf.mxu0
  %v761 = vadd.f32 %v576, %v760
  %v762 = vpop.f32.mrf.mxu0
  %v763 = vadd.f32 %v576, %v762
  %764 = vmatmul.bf16.gmra.mxu0 %v552
  %v765 = vpop.f32.mrf.mxu0
  %v766 = vadd.f32 %v576, %v765
  %v767 = vpop.f32.mrf.mxu0
  %v768 = vadd.f32 %v576, %v767
  %769 = vmatmul.bf16.gmra.mxu0 %v553
  %v770 = vpop.f32.mrf.mxu0
  %v771 = vadd.f32 %v576, %v770
  %v772 = vpop.f32.mrf.mxu0
  %v773 = vadd.f32 %v576, %v772
  %774 = vmatmul.bf16.gmra.mxu0 %v554
  %v775 = vpop.f32.mrf.mxu0
  %v776 = vadd.f32 %v576, %v775
  %v777 = vpop.f32.mrf.mxu0
  %v778 = vadd.f32 %v576, %v777
  %779 = vmatmul.bf16.gmra.mxu0 %v555
  %v780 = vpop.f32.mrf.mxu0
  %v781 = vadd.f32 %v576, %v780
  %v782 = vpop.f32.mrf.mxu0
  %v783 = vadd.f32 %v576, %v782
  %784 = vmatmul.bf16.gmra.mxu0 %v556
  %v785 = vpop.f32.mrf.mxu0
  %v786 = vadd.f32 %v576, %v785
  %v787 = vpop.f32.mrf.mxu0
  %v788 = vadd.f32 %v576, %v787
  %789 = vmatmul.bf16.gmra.mxu0 %v557
  %v790 = vpop.f32.mrf.mxu0
  %v791 = vadd.f32 %v576, %v790
  %v792 = vpop.f32.mrf.mxu0
  %v793 = vadd.f32 %v576, %v792
  %794 = vdwg.mxu0
  %v795 = vmul.f32 %v636, 0.01
  %v796 = vmul.f32 %v638, 0.01
  %v797 = vmul.f32 %v641, 0.01
  %v798 = vmul.f32 %v643, 0.01
  %v799 = vmul.f32 %v646, 0.01
  %v800 = vmul.f32 %v648, 0.01
  %v801 = vmul.f32 %v651, 0.01
  %v802 = vmul.f32 %v653, 0.01
  %v803 = vmul.f32 %v656, 0.01
  %v804 = vmul.f32 %v658, 0.01
  %v805 = vmul.f32 %v661, 0.01
  %v806 = vmul.f32 %v663, 0.01
  %v807 = vmul.f32 %v666, 0.01
  %v808 = vmul.f32 %v668, 0.01
  %v809 = vmul.f32 %v671, 0.01
  %v810 = vmul.f32 %v673, 0.01
  %v811 = vmul.f32 %v676, 0.01
  %v812 = vmul.f32 %v678, 0.01
  %v813 = vmul.f32 %v681, 0.01
  %v814 = vmul.f32 %v683, 0.01
  %v815 = vmul.f32 %v686, 0.01
  %v816 = vmul.f32 %v688, 0.01
  %v817 = vmul.f32 %v691, 0.01
  %v818 = vmul.f32 %v693, 0.01
  %v819 = vmul.f32 %v696, 0.01
  %v820 = vmul.f32 %v698, 0.01
  %v821 = vmul.f32 %v701, 0.01
  %v822 = vmul.f32 %v703, 0.01
  %v823 = vmul.f32 %v706, 0.01
  %v824 = vmul.f32 %v708, 0.01
  %v825 = vmul.f32 %v711, 0.01
  %v826 = vmul.f32 %v713, 0.01
  %v827 = vmul.f32 %v716, 0.01
  %v828 = vmul.f32 %v718, 0.01
  %v829 = vmul.f32 %v721, 0.01
  %v830 = vmul.f32 %v723, 0.01
  %v831 = vmul.f32 %v726, 0.01
  %v832 = vmul.f32 %v728, 0.01
  %v833 = vmul.f32 %v731, 0.01
  %v834 = vmul.f32 %v733, 0.01
  %v835 = vmul.f32 %v736, 0.01
  %v836 = vmul.f32 %v738, 0.01
  %v837 = vmul.f32 %v741, 0.01
  %v838 = vmul.f32 %v743, 0.01
  %v839 = vmul.f32 %v746, 0.01
  %v840 = vmul.f32 %v748, 0.01
  %v841 = vmul.f32 %v751, 0.01
  %v842 = vmul.f32 %v753, 0.01
  %v843 = vmul.f32 %v756, 0.01
  %v844 = vmul.f32 %v758, 0.01
  %v845 = vmul.f32 %v761, 0.01
  %v846 = vmul.f32 %v763, 0.01
  %v847 = vmul.f32 %v766, 0.01
  %v848 = vmul.f32 %v768, 0.01
  %v849 = vmul.f32 %v771, 0.01
  %v850 = vmul.f32 %v773, 0.01
  %v851 = vmul.f32 %v776, 0.01
  %v852 = vmul.f32 %v778, 0.01
  %v853 = vmul.f32 %v781, 0.01
  %v854 = vmul.f32 %v783, 0.01
  %v855 = vmul.f32 %v786, 0.01
  %v856 = vmul.f32 %v788, 0.01
  %v857 = vmul.f32 %v791, 0.01
  %v858 = vmul.f32 %v793, 0.01
  %v859 = vmax.f32 %v636, %v795
  %v860 = vmax.f32 %v638, %v796
  %v861 = vmax.f32 %v641, %v797
  %v862 = vmax.f32 %v643, %v798
  %v863 = vmax.f32 %v646, %v799
  %v864 = vmax.f32 %v648, %v800
  %v865 = vmax.f32 %v651, %v801
  %v866 = vmax.f32 %v653, %v802
  %v867 = vmax.f32 %v656, %v803
  %v868 = vmax.f32 %v658, %v804
  %v869 = vmax.f32 %v661, %v805
  %v870 = vmax.f32 %v663, %v806
  %v871 = vmax.f32 %v666, %v807
  %v872 = vmax.f32 %v668, %v808
  %v873 = vmax.f32 %v671, %v809
  %v874 = vmax.f32 %v673, %v810
  %v875 = vmax.f32 %v676, %v811
  %v876 = vmax.f32 %v678, %v812
  %v877 = vmax.f32 %v681, %v813
  %v878 = vmax.f32 %v683, %v814
  %v879 = vmax.f32 %v686, %v815
  %v880 = vmax.f32 %v688, %v816
  %v881 = vmax.f32 %v691, %v817
  %v882 = vmax.f32 %v693, %v818
  %v883 = vmax.f32 %v696, %v819
  %v884 = vmax.f32 %v698, %v820
  %v885 = vmax.f32 %v701, %v821
  %v886 = vmax.f32 %v703, %v822
  %v887 = vmax.f32 %v706, %v823
  %v888 = vmax.f32 %v708, %v824
  %v889 = vmax.f32 %v711, %v825
  %v890 = vmax.f32 %v713, %v826
  %v891 = vmax.f32 %v716, %v827
  %v892 = vmax.f32 %v718, %v828
  %v893 = vmax.f32 %v721, %v829
  %v894 = vmax.f32 %v723, %v830
  %v895 = vmax.f32 %v726, %v831
  %v896 = vmax.f32 %v728, %v832
  %v897 = vmax.f32 %v731, %v833
  %v898 = vmax.f32 %v733, %v834
  %v899 = vmax.f32 %v736, %v835
  %v900 = vmax.f32 %v738, %v836
  %v901 = vmax.f32 %v741, %v837
  %v902 = vmax.f32 %v743, %v838
  %v903 = vmax.f32 %v746, %v839
  %v904 = vmax.f32 %v748, %v840
  %v905 = vmax.f32 %v751, %v841
  %v906 = vmax.f32 %v753, %v842
  %v907 = vmax.f32 %v756, %v843
  %v908 = vmax.f32 %v758, %v844
  %v909 = vmax.f32 %v761, %v845
  %v910 = vmax.f32 %v763, %v846
  %v911 = vmax.f32 %v766, %v847
  %v912 = vmax.f32 %v768, %v848
  %v913 = vmax.f32 %v771, %v849
  %v914 = vmax.f32 %v773, %v850
  %v915 = vmax.f32 %v776, %v851
  %v916 = vmax.f32 %v778, %v852
  %v917 = vmax.f32 %v781, %v853
  %v918 = vmax.f32 %v783, %v854
  %v919 = vmax.f32 %v786, %v855
  %v920 = vmax.f32 %v788, %v856
  %v921 = vmax.f32 %v791, %v857
  %v922 = vmax.f32 %v793, %v858
  %v923 = vpack.c.bf16 %v860, %v859
  %v924 = vpack.c.bf16 %v862, %v861
  %v925 = vpack.c.bf16 %v864, %v863
  %v926 = vpack.c.bf16 %v866, %v865
  %v927 = vpack.c.bf16 %v868, %v867
  %v928 = vpack.c.bf16 %v870, %v869
  %v929 = vpack.c.bf16 %v872, %v871
  %v930 = vpack.c.bf16 %v874, %v873
  %v931 = vpack.c.bf16 %v876, %v875
  %v932 = vpack.c.bf16 %v878, %v877
  %v933 = vpack.c.bf16 %v880, %v879
  %v934 = vpack.c.bf16 %v882, %v881
  %v935 = vpack.c.bf16 %v884, %v883
  %v936 = vpack.c.bf16 %v886, %v885
  %v937 = vpack.c.bf16 %v888, %v887
  %v938 = vpack.c.bf16 %v890, %v889
  %v939 = vpack.c.bf16 %v892, %v891
  %v940 = vpack.c.bf16 %v894, %v893
  %v941 = vpack.c.bf16 %v896, %v895
  %v942 = vpack.c.bf16 %v898, %v897
  %v943 = vpack.c.bf16 %v900, %v899
  %v944 = vpack.c.bf16 %v902, %v901
  %v945 = vpack.c.bf16 %v904, %v903
  %v946 = vpack.c.bf16 %v906, %v905
  %v947 = vpack.c.bf16 %v908, %v907
  %v948 = vpack.c.bf16 %v910, %v909
  %v949 = vpack.c.bf16 %v912, %v911
  %v950 = vpack.c.bf16 %v914, %v913
  %v951 = vpack.c.bf16 %v916, %v915
  %v952 = vpack.c.bf16 %v918, %v917
  %v953 = vpack.c.bf16 %v920, %v919
  %v954 = vpack.c.bf16 %v922, %v921
  %v955 = vld [vmem:[%s5] sm:$0xf]
  %v956 = vld [vmem:[%s5 + $0x4] sm:$0xf]
  %v957 = vld [vmem:[%s5 + $0x8] sm:$0xf]
  %v958 = vld [vmem:[%s5 + $0xc] sm:$0xf]
  %v959 = vld [vmem:[%s5 + $0x10] sm:$0xf]
  %v960 = vld [vmem:[%s5 + $0x14] sm:$0xf]
  %v961 = vld [vmem:[%s5 + $0x18] sm:$0xf]
  %v962 = vld [vmem:[%s5 + $0x1c] sm:$0xf]
  %v963 = vld [vmem:[%s5 + $0x20] sm:$0xf]
  %v964 = vld [vmem:[%s5 + $0x24] sm:$0xf]
  %v965 = vld [vmem:[%s5 + $0x28] sm:$0xf]
  %v966 = vld [vmem:[%s5 + $0x2c] sm:$0xf]
  %v967 = vld [vmem:[%s5 + $0x30] sm:$0xf]
  %v968 = vld [vmem:[%s5 + $0x34] sm:$0xf]
  %v969 = vld [vmem:[%s5 + $0x38] sm:$0xf]
  %v970 = vld [vmem:[%s5 + $0x3c] sm:$0xf]
  %v971 = vld [vmem:[%s6] sm:$0x1]
  %v973 = vperm.slane %v971, 0
  %v991 = vunpack.c.l.b16 %v955
  %v992 = vunpack.c.l.b16 %v956
  %v993 = vunpack.c.l.b16 %v957
  %v994 = vunpack.c.l.b16 %v958
  %v995 = vunpack.c.l.b16 %v959
  %v996 = vunpack.c.l.b16 %v960
  %v997 = vunpack.c.l.b16 %v961
  %v998 = vunpack.c.l.b16 %v962
  %v999 = vunpack.c.l.b16 %v963
  %v1000 = vunpack.c.l.b16 %v964
  %v1001 = vunpack.c.l.b16 %v965
  %v1002 = vunpack.c.l.b16 %v966
  %v1003 = vunpack.c.l.b16 %v967
  %v1004 = vunpack.c.l.b16 %v968
  %v1005 = vunpack.c.l.b16 %v969
  %v1006 = vunpack.c.l.b16 %v970
  %v1007 = vpack.c.b16 %v992, %v991
  %v1008 = vpack.c.b16 %v994, %v993
  %v1009 = vpack.c.b16 %v996, %v995
  %v1010 = vpack.c.b16 %v998, %v997
  %v1011 = vpack.c.b16 %v1000, %v999
  %v1012 = vpack.c.b16 %v1002, %v1001
  %v1013 = vpack.c.b16 %v1004, %v1003
  %v1014 = vpack.c.b16 %v1006, %v1005
  %1023 = vmatpush.bf16.msra.mxu0 %v1014
  %1024 = vmatpush.bf16.msra.mxu0 %v1013
  %1025 = vmatpush.bf16.msra.mxu0 %v1012
  %1026 = vmatpush.bf16.msra.mxu0 %v1011
  %1027 = vmatpush.bf16.msra.mxu0 %v1010
  %1028 = vmatpush.bf16.msra.mxu0 %v1009
  %1029 = vmatpush.bf16.msra.mxu0 %v1008
  %1030 = vmatpush.bf16.msra.mxu0 %v1007
  %1031 = vmatmul.bf16.gmra.mxu0 %v923
  %v1032 = vpop.f32.mrf.mxu0
  %v1033 = vadd.f32 %v973, %v1032
  %v1034 = vpop.f32.mrf.mxu0
  %v1035 = vadd.f32 %v973, %v1034
  %1036 = vmatmul.bf16.gmra.mxu0 %v924
  %v1037 = vpop.f32.mrf.mxu0
  %v1038 = vadd.f32 %v973, %v1037
  %v1039 = vpop.f32.mrf.mxu0
  %v1040 = vadd.f32 %v973, %v1039
  %1041 = vmatmul.bf16.gmra.mxu0 %v925
  %v1042 = vpop.f32.mrf.mxu0
  %v1043 = vadd.f32 %v973, %v1042
  %v1044 = vpop.f32.mrf.mxu0
  %v1045 = vadd.f32 %v973, %v1044
  %1046 = vmatmul.bf16.gmra.mxu0 %v926
  %v1047 = vpop.f32.mrf.mxu0
  %v1048 = vadd.f32 %v973, %v1047
  %v1049 = vpop.f32.mrf.mxu0
  %v1050 = vadd.f32 %v973, %v1049
  %1051 = vmatmul.bf16.gmra.mxu0 %v927
  %v1052 = vpop.f32.mrf.mxu0
  %v1053 = vadd.f32 %v973, %v1052
  %v1054 = vpop.f32.mrf.mxu0
  %v1055 = vadd.f32 %v973, %v1054
  %1056 = vmatmul.bf16.gmra.mxu0 %v928
  %v1057 = vpop.f32.mrf.mxu0
  %v1058 = vadd.f32 %v973, %v1057
  %v1059 = vpop.f32.mrf.mxu0
  %v1060 = vadd.f32 %v973, %v1059
  %1061 = vmatmul.bf16.gmra.mxu0 %v929
  %v1062 = vpop.f32.mrf.mxu0
  %v1063 = vadd.f32 %v973, %v1062
  %v1064 = vpop.f32.mrf.mxu0
  %v1065 = vadd.f32 %v973, %v1064
  %1066 = vmatmul.bf16.gmra.mxu0 %v930
  %v1067 = vpop.f32.mrf.mxu0
  %v1068 = vadd.f32 %v973, %v1067
  %v1069 = vpop.f32.mrf.mxu0
  %v1070 = vadd.f32 %v973, %v1069
  %1071 = vmatmul.bf16.gmra.mxu0 %v931
  %v1072 = vpop.f32.mrf.mxu0
  %v1073 = vadd.f32 %v973, %v1072
  %v1074 = vpop.f32.mrf.mxu0
  %v1075 = vadd.f32 %v973, %v1074
  %1076 = vmatmul.bf16.gmra.mxu0 %v932
  %v1077 = vpop.f32.mrf.mxu0
  %v1078 = vadd.f32 %v973, %v1077
  %v1079 = vpop.f32.mrf.mxu0
  %v1080 = vadd.f32 %v973, %v1079
  %1081 = vmatmul.bf16.gmra.mxu0 %v933
  %v1082 = vpop.f32.mrf.mxu0
  %v1083 = vadd.f32 %v973, %v1082
  %v1084 = vpop.f32.mrf.mxu0
  %v1085 = vadd.f32 %v973, %v1084
  %1086 = vmatmul.bf16.gmra.mxu0 %v934
  %v1087 = vpop.f32.mrf.mxu0
  %v1088 = vadd.f32 %v973, %v1087
  %v1089 = vpop.f32.mrf.mxu0
  %v1090 = vadd.f32 %v973, %v1089
  %1091 = vmatmul.bf16.gmra.mxu0 %v935
  %v1092 = vpop.f32.mrf.mxu0
  %v1093 = vadd.f32 %v973, %v1092
  %v1094 = vpop.f32.mrf.mxu0
  %v1095 = vadd.f32 %v973, %v1094
  %1096 = vmatmul.bf16.gmra.mxu0 %v936
  %v1097 = vpop.f32.mrf.mxu0
  %v1098 = vadd.f32 %v973, %v1097
  %v1099 = vpop.f32.mrf.mxu0
  %v1100 = vadd.f32 %v973, %v1099
  %1101 = vmatmul.bf16.gmra.mxu0 %v937
  %v1102 = vpop.f32.mrf.mxu0
  %v1103 = vadd.f32 %v973, %v1102
  %v1104 = vpop.f32.mrf.mxu0
  %v1105 = vadd.f32 %v973, %v1104
  %1106 = vmatmul.bf16.gmra.mxu0 %v938
  %v1107 = vpop.f32.mrf.mxu0
  %v1108 = vadd.f32 %v973, %v1107
  %v1109 = vpop.f32.mrf.mxu0
  %v1110 = vadd.f32 %v973, %v1109
  %1111 = vmatmul.bf16.gmra.mxu0 %v939
  %v1112 = vpop.f32.mrf.mxu0
  %v1113 = vadd.f32 %v973, %v1112
  %v1114 = vpop.f32.mrf.mxu0
  %v1115 = vadd.f32 %v973, %v1114
  %1116 = vmatmul.bf16.gmra.mxu0 %v940
  %v1117 = vpop.f32.mrf.mxu0
  %v1118 = vadd.f32 %v973, %v1117
  %v1119 = vpop.f32.mrf.mxu0
  %v1120 = vadd.f32 %v973, %v1119
  %1121 = vmatmul.bf16.gmra.mxu0 %v941
  %v1122 = vpop.f32.mrf.mxu0
  %v1123 = vadd.f32 %v973, %v1122
  %v1124 = vpop.f32.mrf.mxu0
  %v1125 = vadd.f32 %v973, %v1124
  %1126 = vmatmul.bf16.gmra.mxu0 %v942
  %v1127 = vpop.f32.mrf.mxu0
  %v1128 = vadd.f32 %v973, %v1127
  %v1129 = vpop.f32.mrf.mxu0
  %v1130 = vadd.f32 %v973, %v1129
  %1131 = vmatmul.bf16.gmra.mxu0 %v943
  %v1132 = vpop.f32.mrf.mxu0
  %v1133 = vadd.f32 %v973, %v1132
  %v1134 = vpop.f32.mrf.mxu0
  %v1135 = vadd.f32 %v973, %v1134
  %1136 = vmatmul.bf16.gmra.mxu0 %v944
  %v1137 = vpop.f32.mrf.mxu0
  %v1138 = vadd.f32 %v973, %v1137
  %v1139 = vpop.f32.mrf.mxu0
  %v1140 = vadd.f32 %v973, %v1139
  %1141 = vmatmul.bf16.gmra.mxu0 %v945
  %v1142 = vpop.f32.mrf.mxu0
  %v1143 = vadd.f32 %v973, %v1142
  %v1144 = vpop.f32.mrf.mxu0
  %v1145 = vadd.f32 %v973, %v1144
  %1146 = vmatmul.bf16.gmra.mxu0 %v946
  %v1147 = vpop.f32.mrf.mxu0
  %v1148 = vadd.f32 %v973, %v1147
  %v1149 = vpop.f32.mrf.mxu0
  %v1150 = vadd.f32 %v973, %v1149
  %1151 = vmatmul.bf16.gmra.mxu0 %v947
  %v1152 = vpop.f32.mrf.mxu0
  %v1153 = vadd.f32 %v973, %v1152
  %v1154 = vpop.f32.mrf.mxu0
  %v1155 = vadd.f32 %v973, %v1154
  %1156 = vmatmul.bf16.gmra.mxu0 %v948
  %v1157 = vpop.f32.mrf.mxu0
  %v1158 = vadd.f32 %v973, %v1157
  %v1159 = vpop.f32.mrf.mxu0
  %v1160 = vadd.f32 %v973, %v1159
  %1161 = vmatmul.bf16.gmra.mxu0 %v949
  %v1162 = vpop.f32.mrf.mxu0
  %v1163 = vadd.f32 %v973, %v1162
  %v1164 = vpop.f32.mrf.mxu0
  %v1165 = vadd.f32 %v973, %v1164
  %1166 = vmatmul.bf16.gmra.mxu0 %v950
  %v1167 = vpop.f32.mrf.mxu0
  %v1168 = vadd.f32 %v973, %v1167
  %v1169 = vpop.f32.mrf.mxu0
  %v1170 = vadd.f32 %v973, %v1169
  %1171 = vmatmul.bf16.gmra.mxu0 %v951
  %v1172 = vpop.f32.mrf.mxu0
  %v1173 = vadd.f32 %v973, %v1172
  %v1174 = vpop.f32.mrf.mxu0
  %v1175 = vadd.f32 %v973, %v1174
  %1176 = vmatmul.bf16.gmra.mxu0 %v952
  %v1177 = vpop.f32.mrf.mxu0
  %v1178 = vadd.f32 %v973, %v1177
  %v1179 = vpop.f32.mrf.mxu0
  %v1180 = vadd.f32 %v973, %v1179
  %1181 = vmatmul.bf16.gmra.mxu0 %v953
  %v1182 = vpop.f32.mrf.mxu0
  %v1183 = vadd.f32 %v973, %v1182
  %v1184 = vpop.f32.mrf.mxu0
  %v1185 = vadd.f32 %v973, %v1184
  %1186 = vmatmul.bf16.gmra.mxu0 %v954
  %v1187 = vpop.f32.mrf.mxu0
  %v1188 = vadd.f32 %v973, %v1187
  %v1189 = vpop.f32.mrf.mxu0
  %v1190 = vadd.f32 %v973, %v1189
  %1191 = vdwg.mxu0
  %vm1192 = vcmask 130048
  %1193 = vst.msk [vmem:[%s7] sm:$0xff] %vm1192, %v1033
  %1194 = vst.msk [vmem:[%s7 + $0x8] sm:$0xff] %vm1192, %v1035
  %1195 = vst.msk [vmem:[%s7 + $0x10] sm:$0xff] %vm1192, %v1038
  %1196 = vst.msk [vmem:[%s7 + $0x18] sm:$0xff] %vm1192, %v1040
  %1197 = vst.msk [vmem:[%s7 + $0x20] sm:$0xff] %vm1192, %v1043
  %1198 = vst.msk [vmem:[%s7 + $0x28] sm:$0xff] %vm1192, %v1045
  %1199 = vst.msk [vmem:[%s7 + $0x30] sm:$0xff] %vm1192, %v1048
  %1200 = vst.msk [vmem:[%s7 + $0x38] sm:$0xff] %vm1192, %v1050
  %1201 = vst.msk [vmem:[%s7 + $0x40] sm:$0xff] %vm1192, %v1053
  %1202 = vst.msk [vmem:[%s7 + $0x48] sm:$0xff] %vm1192, %v1055
  %1203 = vst.msk [vmem:[%s7 + $0x50] sm:$0xff] %vm1192, %v1058
  %1204 = vst.msk [vmem:[%s7 + $0x58] sm:$0xff] %vm1192, %v1060
  %1205 = vst.msk [vmem:[%s7 + $0x60] sm:$0xff] %vm1192, %v1063
  %1206 = vst.msk [vmem:[%s7 + $0x68] sm:$0xff] %vm1192, %v1065
  %1207 = vst.msk [vmem:[%s7 + $0x70] sm:$0xff] %vm1192, %v1068
  %1208 = vst.msk [vmem:[%s7 + $0x78] sm:$0xff] %vm1192, %v1070
  %1209 = vst.msk [vmem:[%s7 + $0x80] sm:$0xff] %vm1192, %v1073
  %1210 = vst.msk [vmem:[%s7 + $0x88] sm:$0xff] %vm1192, %v1075
  %1211 = vst.msk [vmem:[%s7 + $0x90] sm:$0xff] %vm1192, %v1078
  %1212 = vst.msk [vmem:[%s7 + $0x98] sm:$0xff] %vm1192, %v1080
  %1213 = vst.msk [vmem:[%s7 + $0xa0] sm:$0xff] %vm1192, %v1083
  %1214 = vst.msk [vmem:[%s7 + $0xa8] sm:$0xff] %vm1192, %v1085
  %1215 = vst.msk [vmem:[%s7 + $0xb0] sm:$0xff] %vm1192, %v1088
  %1216 = vst.msk [vmem:[%s7 + $0xb8] sm:$0xff] %vm1192, %v1090
  %1217 = vst.msk [vmem:[%s7 + $0xc0] sm:$0xff] %vm1192, %v1093
  %1218 = vst.msk [vmem:[%s7 + $0xc8] sm:$0xff] %vm1192, %v1095
  %1219 = vst.msk [vmem:[%s7 + $0xd0] sm:$0xff] %vm1192, %v1098
  %1220 = vst.msk [vmem:[%s7 + $0xd8] sm:$0xff] %vm1192, %v1100
  %1221 = vst.msk [vmem:[%s7 + $0xe0] sm:$0xff] %vm1192, %v1103
  %1222 = vst.msk [vmem:[%s7 + $0xe8] sm:$0xff] %vm1192, %v1105
  %1223 = vst.msk [vmem:[%s7 + $0xf0] sm:$0xff] %vm1192, %v1108
  %1224 = vst.msk [vmem:[%s7 + $0xf8] sm:$0xff] %vm1192, %v1110
  %1225 = vst.msk [vmem:[%s7 + $0x100] sm:$0xff] %vm1192, %v1113
  %1226 = vst.msk [vmem:[%s7 + $0x108] sm:$0xff] %vm1192, %v1115
  %1227 = vst.msk [vmem:[%s7 + $0x110] sm:$0xff] %vm1192, %v1118
  %1228 = vst.msk [vmem:[%s7 + $0x118] sm:$0xff] %vm1192, %v1120
  %1229 = vst.msk [vmem:[%s7 + $0x120] sm:$0xff] %vm1192, %v1123
  %1230 = vst.msk [vmem:[%s7 + $0x128] sm:$0xff] %vm1192, %v1125
  %1231 = vst.msk [vmem:[%s7 + $0x130] sm:$0xff] %vm1192, %v1128
  %1232 = vst.msk [vmem:[%s7 + $0x138] sm:$0xff] %vm1192, %v1130
  %1233 = vst.msk [vmem:[%s7 + $0x140] sm:$0xff] %vm1192, %v1133
  %1234 = vst.msk [vmem:[%s7 + $0x148] sm:$0xff] %vm1192, %v1135
  %1235 = vst.msk [vmem:[%s7 + $0x150] sm:$0xff] %vm1192, %v1138
  %1236 = vst.msk [vmem:[%s7 + $0x158] sm:$0xff] %vm1192, %v1140
  %1237 = vst.msk [vmem:[%s7 + $0x160] sm:$0xff] %vm1192, %v1143
  %1238 = vst.msk [vmem:[%s7 + $0x168] sm:$0xff] %vm1192, %v1145
  %1239 = vst.msk [vmem:[%s7 + $0x170] sm:$0xff] %vm1192, %v1148
  %1240 = vst.msk [vmem:[%s7 + $0x178] sm:$0xff] %vm1192, %v1150
  %1241 = vst.msk [vmem:[%s7 + $0x180] sm:$0xff] %vm1192, %v1153
  %1242 = vst.msk [vmem:[%s7 + $0x188] sm:$0xff] %vm1192, %v1155
  %1243 = vst.msk [vmem:[%s7 + $0x190] sm:$0xff] %vm1192, %v1158
  %1244 = vst.msk [vmem:[%s7 + $0x198] sm:$0xff] %vm1192, %v1160
  %1245 = vst.msk [vmem:[%s7 + $0x1a0] sm:$0xff] %vm1192, %v1163
  %1246 = vst.msk [vmem:[%s7 + $0x1a8] sm:$0xff] %vm1192, %v1165
  %1247 = vst.msk [vmem:[%s7 + $0x1b0] sm:$0xff] %vm1192, %v1168
  %1248 = vst.msk [vmem:[%s7 + $0x1b8] sm:$0xff] %vm1192, %v1170
  %1249 = vst.msk [vmem:[%s7 + $0x1c0] sm:$0xff] %vm1192, %v1173
  %1250 = vst.msk [vmem:[%s7 + $0x1c8] sm:$0xff] %vm1192, %v1175
  %1251 = vst.msk [vmem:[%s7 + $0x1d0] sm:$0xff] %vm1192, %v1178
  %1252 = vst.msk [vmem:[%s7 + $0x1d8] sm:$0xff] %vm1192, %v1180
  %1253 = vst.msk [vmem:[%s7 + $0x1e0] sm:$0xff] %vm1192, %v1183
  %1254 = vst.msk [vmem:[%s7 + $0x1e8] sm:$0xff] %vm1192, %v1185
  %1255 = vst.msk [vmem:[%s7 + $0x1f0] sm:$0xff] %vm1192, %v1188
  %1256 = vst.msk [vmem:[%s7 + $0x1f8] sm:$0xff] %vm1192, %v1190
  // Predicated region
  $region30: #{tpu_custom_call.1} parent=0 // pred_check
    _
  $region31: #{tpu_custom_call.1} parent=0 // pred_check_branch
    %1258 = sbr.rel (0) target = $region33
  $region32: #{tpu_custom_call.1} parent=0 // pred_region
    _
  $region33: #{tpu_custom_call.1} parent=0 // pred_fallthru
    _
  // Predicated region
  $region34: #{tpu_custom_call.1} parent=0 // pred_check
    _
  $region35: #{tpu_custom_call.1} parent=0 // pred_check_branch
    %1260 = sbr.rel (0) target = $region37
  $region36: #{tpu_custom_call.1} parent=0 // pred_region
    _
  $region37: #{tpu_custom_call.1} parent=0 // pred_fallthru
    _

</llo_original>
